<compile_context>
chip_gen: v5e
topology: v5e:2x2
jax: 0.10.0
libtpu: 0.0.40
codegen_flags: <defaults>
</compile_context>

<pallas_src>
import functools

import jax
import jax.numpy as jnp
from jax import lax
from jax.experimental import pallas as pl
from jax.experimental.pallas import tpu as pltpu


def _box_decode_kernel(p_ref, scale_ref, o_ref, *, width, attrs, hw_tile):
    """Decode one (ba_tile, attrs, hw_tile) slab; store it transposed.

    p_ref     : (ba_tile, attrs, hw_tile)  VMEM raw predictions
    scale_ref : (ba_tile, attrs, 1)        VMEM per-row output scale
    o_ref     : (ba_tile, hw_tile, attrs)  VMEM decoded output (PyTorch layout)
    """
    j = pl.program_id(1)                       # hw-tile index
    p = p_ref[...]                             # (ba, attrs, hw)
    ba_tile = p.shape[0]

    # --- full-slab activation: rows 2/3 use exp, everything else sigmoid ----
    row = lax.broadcasted_iota(jnp.int32, (1, attrs, hw_tile), 1)
    use_exp = (row == 2) | (row == 3)
    val = jnp.where(use_exp, jnp.exp(p), jax.nn.sigmoid(p))

    # --- spatial cell offsets generated in-kernel (no HBM grid input) -------
    lane = lax.broadcasted_iota(jnp.int32, (1, attrs, hw_tile), 2)
    pos = lane.astype(jnp.float32) + (j * hw_tile).astype(jnp.float32)
    # exact floor-divide for small non-negative integers in f32
    gy = jnp.floor((pos + 0.5) / width)        # = pos // width
    gx = pos - gy * width                      # = pos %  width
    offset = jnp.where(row == 0, gx, jnp.where(row == 1, gy, 0.0))

    out = (val + offset) * scale_ref[...]      # (ba, attrs, hw)

    # --- fused output transpose ---------------------------------------------
    # Pad the two minor dims to the native (8, 128) tiling so the transpose is
    # fully aligned, swap the minor dims, slice back, store.
    pad_a = (-attrs) % 8
    pad_l = (-hw_tile) % 128
    if pad_a:
        out = jnp.concatenate(
            [out, jnp.zeros((ba_tile, pad_a, hw_tile), out.dtype)], axis=1)
    if pad_l:
        out = jnp.concatenate(
            [out, jnp.zeros((ba_tile, attrs + pad_a, pad_l), out.dtype)], axis=2)
    out_t = jnp.swapaxes(out, 1, 2)            # (ba, hw+pad_l, attrs+pad_a)
    o_ref[...] = out_t[:, :hw_tile, :attrs]


def box_decode(inp, anchors, num_classes, img_size):
    """Pallas equivalent of BoxDecode.forward.

    inp: (B, A*(5+num_classes), H, W) float32, NCHW like the PyTorch module.
    Returns (B, A*H*W, 5+num_classes) float32.
    """
    B, C, H, W = inp.shape
    A = len(anchors)
    attrs = 5 + num_classes
    assert C == A * attrs, "channel dim must equal num_anchors * (5 + num_classes)"

    stride_h = img_size[1] / H
    stride_w = img_size[0] / W
    HW = H * W
    BA = B * A

    # Per-(anchor, attribute) output scale:
    #   row 0 -> stride_w, row 1 -> stride_h,
    #   row 2 -> scaled_anchor_w * stride_w, row 3 -> scaled_anchor_h * stride_h,
    #   rows >= 4 (objectness / classes) -> 1.
    scaled = jnp.array([(aw / stride_w, ah / stride_h) for aw, ah in anchors],
                       dtype=jnp.float32)                        # (A, 2)
    sw = jnp.float32(stride_w)
    sh = jnp.float32(stride_h)
    scale_rows = jnp.concatenate([
        jnp.broadcast_to(jnp.stack([sw, sh]), (A, 2)),
        scaled * jnp.stack([sw, sh]),
        jnp.ones((A, attrs - 4), jnp.float32),
    ], axis=1)                                                   # (A, attrs)
    scale_tab = jnp.broadcast_to(scale_rows[None], (B, A, attrs)
                                 ).reshape(BA, attrs, 1)

    # Free reshape: (B, A*attrs, H, W) -> (B*A, attrs, H*W) (same memory order).
    pred = inp.astype(jnp.float32).reshape(BA, attrs, HW)

    # ---- tile selection ------------------------------------------------------
    # HW tile must be a 128-multiple or the full extent (legal per (8,128) rule).
    if HW % 128 == 0:
        hw_tile = min(HW, 2048)
    else:
        hw_tile = HW
    num_hw = pl.cdiv(HW, hw_tile)

    # Keep (input + output) blocks, double-buffered, around <=16 MiB live.
    per_slab = 2 * 2 * attrs * hw_tile * 4
    ba_tile = max(1, min(BA, (16 * 1024 * 1024) // per_slab))
    if num_hw == 1 and BA >= 2:
        # keep >=2 parallel grid steps so both v7x TensorCores get work
        ba_tile = min(ba_tile, pl.cdiv(BA, 2))
    num_ba = pl.cdiv(BA, ba_tile)

    kernel = functools.partial(_box_decode_kernel,
                               width=W, attrs=attrs, hw_tile=hw_tile)

    out = pl.pallas_call(
        kernel,
        out_shape=jax.ShapeDtypeStruct((BA, HW, attrs), jnp.float32),
        grid=(num_ba, num_hw),
        in_specs=[
            pl.BlockSpec((ba_tile, attrs, hw_tile), lambda i, j: (i, 0, j)),
            pl.BlockSpec((ba_tile, attrs, 1), lambda i, j: (i, 0, 0)),
        ],
        out_specs=pl.BlockSpec((ba_tile, hw_tile, attrs), lambda i, j: (i, j, 0)),
        compiler_params=pltpu.CompilerParams(
            dimension_semantics=("parallel", "parallel"),
            vmem_limit_bytes=32 * 1024 * 1024),
    )(pred, scale_tab)

    # Free reshape (no transpose): (B*A, HW, attrs) -> (B, A*HW, attrs).
    return out.reshape(B, A * HW, attrs)


def box_decode_ref(inp, anchors, num_classes, img_size):
    """Pure-JAX reference mirroring the PyTorch forward (assumes H == W)."""
    B, C, H, W = inp.shape
    A = len(anchors)
    attrs = 5 + num_classes
    stride_h = img_size[1] / H
    stride_w = img_size[0] / W
    scaled = jnp.array([(a_w / stride_w, a_h / stride_h) for a_w, a_h in anchors],
                       dtype=jnp.float32)
    pred = inp.reshape(B, A, attrs, H, W).transpose(0, 1, 3, 4, 2)  # (B,A,H,W,attrs)
    x = jax.nn.sigmoid(pred[..., 0])
    y = jax.nn.sigmoid(pred[..., 1])
    w = pred[..., 2]
    h = pred[..., 3]
    conf = jax.nn.sigmoid(pred[..., 4])
    cls = jax.nn.sigmoid(pred[..., 5:])
    gx = jnp.arange(W, dtype=jnp.float32)[None, None, None, :]
    gy = jnp.arange(H, dtype=jnp.float32)[None, None, :, None]
    bx = x + gx
    by = y + gy
    bw = jnp.exp(w) * scaled[None, :, None, None, 0]
    bh = jnp.exp(h) * scaled[None, :, None, None, 1]
    boxes = jnp.stack([bx, by, bw, bh], axis=-1).reshape(B, -1, 4)
    scale = jnp.array([stride_w, stride_h, stride_w, stride_h], jnp.float32)
    return jnp.concatenate(
        [boxes * scale, conf.reshape(B, -1, 1), cls.reshape(B, -1, num_classes)],
        axis=-1)


if __name__ == "__main__":
    # Small deterministic config: 3 anchors, 2 classes, 16x16 feature map.
    anchors = [(10.0, 13.0), (16.0, 30.0), (33.0, 23.0)]
    num_classes = 2
    img_size = (128, 128)           # (img_w, img_h)
    B, H, W = 2, 16, 16
    A = len(anchors)
    attrs = 5 + num_classes

    key = jax.random.PRNGKey(0)
    x = jax.random.normal(key, (B, A * attrs, H, W), dtype=jnp.float32)

    fn = jax.jit(lambda t: box_decode(t, anchors, num_classes, img_size))
    out = jax.block_until_ready(fn(x))

    ref = box_decode_ref(x, anchors, num_classes, img_size)
    assert out.shape == (B, A * H * W, attrs)
    assert jnp.allclose(out, ref, atol=1e-4, rtol=1e-5), "mismatch vs reference"

    print("KERNEL_OK")
</pallas_src>

<mosaic_0001>
module attributes {stable_mosaic.version = 11 : i64} {
  func.func @_box_decode_kernel(%arg0: i32, %arg1: i32, %arg2: memref<3x7x256xf32, #tpu.memory_space<vmem>>, %arg3: memref<3x7x1xf32, #tpu.memory_space<vmem>>, %arg4: memref<3x256x7xf32, #tpu.memory_space<vmem>>) attributes {dimension_semantics = [#tpu.dimension_semantics<parallel>, #tpu.dimension_semantics<parallel>], iteration_bounds = array<i64: 2, 1>, scalar_prefetch = 0 : i64, scratch_operands = 0 : i64, tpu.core_type = #tpu.core_type<tc>, window_params = [{transform_indices = @transform_0, window_bounds = array<i64: 3, 7, 256>}, {transform_indices = @transform_1, window_bounds = array<i64: 3, 7, 1>}, {transform_indices = @transform_2, window_bounds = array<i64: 3, 256, 7>}]} {
    %c0 = arith.constant 0 : index
    %c0_0 = arith.constant 0 : index
    %c0_1 = arith.constant 0 : index
    %0 = vector.load %arg2[%c0, %c0_0, %c0_1] : memref<3x7x256xf32, #tpu.memory_space<vmem>>, vector<3x7x256xf32>
    %1 = tpu.iota {dimensions = array<i32: 1>} : vector<1x7x256xi32>
    %c2_i32 = arith.constant 2 : i32
    %2 = vector.broadcast %c2_i32 : i32 to vector<1x7x256xi32>
    %3 = arith.cmpi eq, %1, %2 : vector<1x7x256xi32>
    %c3_i32 = arith.constant 3 : i32
    %4 = vector.broadcast %c3_i32 : i32 to vector<1x7x256xi32>
    %5 = arith.cmpi eq, %1, %4 : vector<1x7x256xi32>
    %6 = arith.ori %3, %5 : vector<1x7x256xi1>
    %7 = math.exp %0 : vector<3x7x256xf32>
    %8 = arith.negf %0 : vector<3x7x256xf32>
    %9 = math.exp %8 : vector<3x7x256xf32>
    %cst = arith.constant 1.000000e+00 : f32
    %10 = vector.broadcast %cst : f32 to vector<3x7x256xf32>
    %11 = arith.addf %10, %9 : vector<3x7x256xf32>
    %12 = arith.divf %10, %11 : vector<3x7x256xf32>
    %13 = vector.shape_cast %6 : vector<1x7x256xi1> to vector<1x7x256xi1>
    %14 = vector.broadcast %13 : vector<1x7x256xi1> to vector<3x7x256xi1>
    %15 = arith.select %14, %7, %12 : vector<3x7x256xi1>, vector<3x7x256xf32>
    %16 = tpu.iota {dimensions = array<i32: 2>} : vector<1x7x256xi32>
    %17 = arith.sitofp %16 : vector<1x7x256xi32> to vector<1x7x256xf32>
    %c256_i32 = arith.constant 256 : i32
    %18 = arith.muli %arg1, %c256_i32 : i32
    %19 = arith.sitofp %18 : i32 to f32
    %20 = vector.broadcast %19 : f32 to vector<1x7x256xf32>
    %21 = arith.addf %17, %20 : vector<1x7x256xf32>
    %cst_2 = arith.constant 5.000000e-01 : f32
    %22 = vector.broadcast %cst_2 : f32 to vector<1x7x256xf32>
    %23 = arith.addf %21, %22 : vector<1x7x256xf32>
    %cst_3 = arith.constant 1.600000e+01 : f32
    %24 = vector.broadcast %cst_3 : f32 to vector<1x7x256xf32>
    %25 = arith.divf %23, %24 : vector<1x7x256xf32>
    %26 = math.floor %25 : vector<1x7x256xf32>
    %cst_4 = arith.constant 1.600000e+01 : f32
    %27 = vector.broadcast %cst_4 : f32 to vector<1x7x256xf32>
    %28 = arith.mulf %26, %27 : vector<1x7x256xf32>
    %29 = arith.subf %21, %28 : vector<1x7x256xf32>
    %c0_i32 = arith.constant 0 : i32
    %30 = vector.broadcast %c0_i32 : i32 to vector<1x7x256xi32>
    %31 = arith.cmpi eq, %1, %30 : vector<1x7x256xi32>
    %c1_i32 = arith.constant 1 : i32
    %32 = vector.broadcast %c1_i32 : i32 to vector<1x7x256xi32>
    %33 = arith.cmpi eq, %1, %32 : vector<1x7x256xi32>
    %cst_5 = arith.constant 0.000000e+00 : f32
    %34 = vector.broadcast %cst_5 : f32 to vector<1x7x256xf32>
    %35 = arith.select %33, %26, %34 : vector<1x7x256xi1>, vector<1x7x256xf32>
    %36 = arith.select %31, %29, %35 : vector<1x7x256xi1>, vector<1x7x256xf32>
    %37 = vector.broadcast %36 : vector<1x7x256xf32> to vector<3x7x256xf32>
    %38 = arith.addf %15, %37 : vector<3x7x256xf32>
    %c0_6 = arith.constant 0 : index
    %c0_7 = arith.constant 0 : index
    %c0_8 = arith.constant 0 : index
    %39 = vector.load %arg3[%c0_6, %c0_7, %c0_8] : memref<3x7x1xf32, #tpu.memory_space<vmem>>, vector<3x7x1xf32>
    %40 = vector.broadcast %39 : vector<3x7x1xf32> to vector<3x7x256xf32>
    %41 = arith.mulf %38, %40 : vector<3x7x256xf32>
    %cst_9 = arith.constant 0.000000e+00 : f32
    %42 = vector.broadcast %cst_9 : f32 to vector<3x1x256xf32>
    %43 = tpu.concatenate %41, %42 in 1 : vector<3x7x256xf32>, vector<3x1x256xf32> -> vector<3x8x256xf32>
    %44 = tpu.transpose %43, [0, 2, 1] : vector<3x8x256xf32> -> vector<3x256x8xf32>
    %45 = vector.extract_strided_slice %44 {offsets = [0, 0, 0], sizes = [3, 256, 7], strides = [1, 1, 1]} : vector<3x256x8xf32> to vector<3x256x7xf32>
    %c0_10 = arith.constant 0 : index
    %c0_11 = arith.constant 0 : index
    %c0_12 = arith.constant 0 : index
    %46 = vector.load %arg4[%c0_10, %c0_11, %c0_12] : memref<3x256x7xf32, #tpu.memory_space<vmem>>, vector<3x256x7xf32>
    tpu.vector_store %arg4[%c0_10, %c0_11, %c0_12], %45 {strides = array<i32>} : memref<3x256x7xf32, #tpu.memory_space<vmem>>, vector<3x256x7xf32>,
    return
  }
  func.func @transform_0(%arg0: i32, %arg1: i32) -> (i32, i32, i32) {
    %c0_i32 = arith.constant 0 : i32
    %c0_i32_0 = arith.constant 0 : i32
    return %arg0, %c0_i32, %arg1 : i32, i32, i32
  }
  func.func @transform_1(%arg0: i32, %arg1: i32) -> (i32, i32, i32) {
    %c0_i32 = arith.constant 0 : i32
    %c0_i32_0 = arith.constant 0 : i32
    %c0_i32_1 = arith.constant 0 : i32
    return %arg0, %c0_i32, %c0_i32_0 : i32, i32, i32
  }
  func.func @transform_2(%arg0: i32, %arg1: i32) -> (i32, i32, i32) {
    %c0_i32 = arith.constant 0 : i32
    %c0_i32_0 = arith.constant 0 : i32
    return %arg0, %arg1, %c0_i32 : i32, i32, i32
  }
}

</mosaic_0001>

<llo_original>
// kernel: _lambda_.1
$region0: #{_lambda_.1}
  #allocation0 [shape = 'u32[]', space=smem, size = 0x4, offset = 0x4, fixed_abs, tag = 'smem constant byte address 0x4 - core index']
  #allocation1 [shape = 'u32[72,128]{1,0:T(1,128)}', space=vmem, size = 0x9000, scoped, tag = 'internal scratch']
  %s0 = inlined_call_operand.vmem [shape: f32[6,7,256], index: 0, kind: input, shape index: {}]
  %s1 = inlined_call_operand.vmem [shape: f32[6,7,1], index: 1, kind: input, shape index: {}]
  %s2 = inlined_call_operand.vmem [shape: f32[6,256,7], index: 2, kind: output, shape index: {}]
  %s3 = sld [smem:[#allocation0]]
  $region41: #{_lambda_.1} parent=0
    _
  %s5 = ssub.s32 1, %s3
  %s6 = scalar_select 0, %s5, %s3
  loop: start=0, step=1, limit=4
  $region2: #{_lambda_.1} parent=0 // loop_pre_header
    _
  $region3: #{_lambda_.1} parent=0 // loop_header
    %s8 = sphi 0, %s12
    %p9 = scmp.ge.s32.totalorder %s8, 4
    %s15 = sphi 0, %s27
    %s16 = sphi 0, %s23
    %s17 = sphi 0, %s15
    %s18 = sphi 0, %s16
    %s19 = sphi 0, %s17
    %s20 = sphi 0, %s18
    %s32 = sphi 0, %s34
    %s35 = sphi 0, %s32
    %s36 = sphi 0, %s35
    %s52 = sphi 0, %s36
    %s58 = sphi 0, %s60
    %s61 = sphi 0, %s58
    %s62 = sphi 0, %s61
    %s78 = sphi 0, %s62
    %s86 = sphi 0, %s88
    %s89 = sphi 0, %s86
    %s90 = sphi 0, %s89
    %s106 = sphi 0, %s90
  $region4: #{_lambda_.1} parent=0 // loop_header_branch
    %11 = sbr.rel (%p9) target = $region8
  $region5: #{_lambda_.1} parent=0 // loop_body
    %s13 = ssub.s32 %s8, 1
    %s14 = ssub.s32 %s8, 2
    %s21 = sadd.s32 1, %s16
    %p22 = scmp.ge.s32.totalorder %s21, 1
    %s23 = scalar_select %p22, 0, %s21
    %s24 = sadd.s32 1, %s15
    %s25 = scalar_select %p22, %s24, %s15
    %p26 = scmp.ge.s32.totalorder %s25, 2
    %s27 = scalar_select %p26, 0, %s25
    %s28 = ssub.s32 %s15, %s27
    %s29 = ssub.s32 %s16, %s23
    %s30 = sor.u32 %s28, %s29
    %p31 = scmp.eq.s32.totalorder %s30, 0
    %s33 = sadd.s32 %s32, 1
    %s34 = scalar_select %p31, %s32, %s33
    %p37 = pneg %p31
    %p38 = scmp.eq.s32.totalorder %s8, 1
    %p39 = por %p37, %p38
    %p40 = scmp.ne.s32.totalorder %s32, %s35
    %p41 = scmp.eq.s32.totalorder %s8, 0
    %p42 = por %p40, %p41
    %p43 = scmp.ne.s32.totalorder %s32, %s35
    %p44 = scmp.eq.s32.totalorder %s13, 1
    %p45 = por %p43, %p44
    %p46 = scmp.ne.s32.totalorder %s35, %s36
    %p47 = scmp.eq.s32.totalorder %s13, 0
    %p48 = por %p46, %p47
    %p49 = scmp.ne.s32.totalorder %s35, %s36
    %p50 = scmp.eq.s32.totalorder %s14, 1
    %p51 = por %p49, %p50
    %p53 = scmp.ne.s32.totalorder %s36, %s52
    %p54 = scmp.eq.s32.totalorder %s14, 0
    %p55 = por %p53, %p54
    %s56 = ssub.s32 %s15, %s27
    %p57 = scmp.eq.s32.totalorder %s56, 0
    %s59 = sadd.s32 %s58, 1
    %s60 = scalar_select %p57, %s58, %s59
    %p63 = pneg %p57
    %p64 = scmp.eq.s32.totalorder %s8, 1
    %p65 = por %p63, %p64
    %p66 = scmp.ne.s32.totalorder %s58, %s61
    %p67 = scmp.eq.s32.totalorder %s8, 0
    %p68 = por %p66, %p67
    %p69 = scmp.ne.s32.totalorder %s58, %s61
    %p70 = scmp.eq.s32.totalorder %s13, 1
    %p71 = por %p69, %p70
    %p72 = scmp.ne.s32.totalorder %s61, %s62
    %p73 = scmp.eq.s32.totalorder %s13, 0
    %p74 = por %p72, %p73
    %p75 = scmp.ne.s32.totalorder %s61, %s62
    %p76 = scmp.eq.s32.totalorder %s14, 1
    %p77 = por %p75, %p76
    %p79 = scmp.ne.s32.totalorder %s62, %s78
    %p80 = scmp.eq.s32.totalorder %s14, 0
    %p81 = por %p79, %p80
    %s82 = ssub.s32 %s15, %s27
    %s83 = ssub.s32 %s16, %s23
    %s84 = sor.u32 %s82, %s83
    %p85 = scmp.eq.s32.totalorder %s84, 0
    %s87 = sadd.s32 %s86, 1
    %s88 = scalar_select %p85, %s86, %s87
    %p91 = pneg %p85
    %p92 = scmp.eq.s32.totalorder %s8, 1
    %p93 = por %p91, %p92
    %p94 = scmp.ne.s32.totalorder %s86, %s89
    %p95 = scmp.eq.s32.totalorder %s8, 0
    %p96 = por %p94, %p95
    %p97 = scmp.ne.s32.totalorder %s86, %s89
    %p98 = scmp.eq.s32.totalorder %s13, 1
    %p99 = por %p97, %p98
    %p100 = scmp.ne.s32.totalorder %s89, %s90
    %p101 = scmp.eq.s32.totalorder %s13, 0
    %p102 = por %p100, %p101
    %p103 = scmp.ne.s32.totalorder %s89, %s90
    %p104 = scmp.eq.s32.totalorder %s14, 1
    %p105 = por %p103, %p104
    %p107 = scmp.ne.s32.totalorder %s90, %s106
    %p108 = scmp.eq.s32.totalorder %s14, 0
    %p109 = por %p107, %p108
    %p110 = scmp.le.s32.totalorder 1, %s8
    %p111 = scmp.lt.s32.totalorder %s8, 3
    %p112 = pnand %p110, %p111
    %p113 = pneg %p112
    // Predicated region
    $region9: #{_lambda_.1} parent=5 // pred_check
      _
    $region10: #{_lambda_.1} parent=5 // pred_check_branch
      %115 = sbr.rel (%p112) target = $region12
    $region11: #{_lambda_.1} parent=5 // pred_region
      %s116 = ssub.s32 %s8, 1
    $region12: #{_lambda_.1} parent=5 // pred_fallthru
      _
    %p117 = scmp.lt.s32.totalorder %s8, 2
    // Predicated region
    $region13: #{_lambda_.1} parent=5 // pred_check
      %p118 = pneg %p117
    $region14: #{_lambda_.1} parent=5 // pred_check_branch
      %120 = sbr.rel (%p118) target = $region16
    $region15: #{_lambda_.1} parent=5 // pred_region
      // Predicated region
      $region17: #{_lambda_.1} parent=15 // pred_check
        %p121 = pneg %p42
      $region18: #{_lambda_.1} parent=15 // pred_check_branch
        %123 = sbr.rel (%p121) target = $region20
      $region19: #{_lambda_.1} parent=15 // pred_region
        %s124 = smul.u32 3, %s15
        %s125 = smul.u32 2, %s16
        %p126 = scmp.lt.s32.totalorder %s124, 5
        %s127 = scalar_select %p126, %s124, 5
        %p128 = scmp.lt.s32.totalorder %s125, 1
        %s129 = scalar_select %p128, %s125, 1
        %s130 = smul.addr %s127, 2
        %s131 = sadd.s32 %s129, %s130
        %s132 = smul.addr %s131, 8
        %s133 = scalar_lea.vmem %s0, %s132
        %s134 = smul.u32 3, %s15
        %s135 = smul.u32 2, %s16
      $region20: #{_lambda_.1} parent=15 // pred_fallthru
        _
      // Predicated region
      $region21: #{_lambda_.1} parent=15 // pred_check
        %p136 = pneg %p68
      $region22: #{_lambda_.1} parent=15 // pred_check_branch
        %138 = sbr.rel (%p136) target = $region24
      $region23: #{_lambda_.1} parent=15 // pred_region
        %s139 = smul.u32 3, %s15
        %p140 = scmp.lt.s32.totalorder %s139, 5
        %s141 = scalar_select %p140, %s139, 5
        %s142 = smul.addr %s141, 8
        %s143 = scalar_lea.vmem %s1, %s142
        %s144 = smul.u32 3, %s15
      $region24: #{_lambda_.1} parent=15 // pred_fallthru
        _
    $region16: #{_lambda_.1} parent=5 // pred_fallthru
      _
    %p145 = scmp.le.s32.totalorder 1, %s8
    %p146 = scmp.lt.s32.totalorder %s8, 3
    %p147 = pnand %p145, %p146
    %p148 = pneg %p147
    // Predicated region
    $region25: #{_lambda_.1} parent=5 // pred_check
      _
    $region26: #{_lambda_.1} parent=5 // pred_check_branch
      %150 = sbr.rel (%p147) target = $region28
    $region27: #{_lambda_.1} parent=5 // pred_region
      %s151 = ssub.s32 %s8, 1
      %s152 = smul.u32 3, %s17
      %s153 = smul.u32 2, %s18
      %p154 = scmp.lt.s32.totalorder %s152, 5
      %s155 = scalar_select %p154, %s152, 5
      %p156 = scmp.lt.s32.totalorder %s153, 1
      %s157 = scalar_select %p156, %s153, 1
      %s158 = smul.addr %s155, 2
      %s159 = sadd.s32 %s157, %s158
      %s160 = smul.addr %s159, 8
      %s161 = scalar_lea.vmem %s0, %s160
      %p162 = pneg %p48
      %p163 = pneg %p45
      %s164 = smul.u32 3, %s17
      %p165 = scmp.lt.s32.totalorder %s164, 5
      %s166 = scalar_select %p165, %s164, 5
      %s167 = smul.addr %s166, 8
      %s168 = scalar_lea.vmem %s1, %s167
      %p169 = pneg %p74
      %p170 = pneg %p71
      %p171 = pneg %p102
      %p172 = pneg %p99
      %s173 = smul.u32 3, %s17
      %s174 = smul.u32 32, %s18
      %p175 = scmp.lt.s32.totalorder %s173, 5
      %s176 = scalar_select %p175, %s173, 5
      %p177 = scmp.lt.s32.totalorder %s174, 31
      %s178 = scalar_select %p177, %s174, 31
      %s179 = smul.addr %s176, 32
      %s180 = sadd.s32 %s178, %s179
      %s181 = smul.addr %s180, 8
      %s182 = scalar_lea.vmem %s2, %s181
      %s183 = smul.u32 3, %s17
      %s184 = smul.u32 2, %s18
      %p185 = scmp.lt.s32.totalorder %s183, 5
      %s186 = scalar_select %p185, %s183, 5
      %p187 = scmp.lt.s32.totalorder %s184, 1
      %s188 = scalar_select %p187, %s184, 1
      %s189 = smul.addr %s186, 2
      %s190 = sadd.s32 %s188, %s189
      %s191 = smul.addr %s190, 8
      %s192 = scalar_lea.vmem %s0, %s191
      %s193 = smul.u32 3, %s17
      %s194 = smul.u32 2, %s18
      %s195 = smul.u32 3, %s17
      %p196 = scmp.lt.s32.totalorder %s195, 5
      %s197 = scalar_select %p196, %s195, 5
      %s198 = smul.addr %s197, 8
      %s199 = scalar_lea.vmem %s1, %s198
      %s200 = smul.u32 3, %s17
      %s201 = smul.u32 3, %s17
      %s202 = smul.u32 32, %s18
      %p203 = scmp.lt.s32.totalorder %s201, 5
      %s204 = scalar_select %p203, %s201, 5
      %p205 = scmp.lt.s32.totalorder %s202, 31
      %s206 = scalar_select %p205, %s202, 31
      %s207 = smul.addr %s204, 32
      %s208 = sadd.s32 %s206, %s207
      %s209 = smul.addr %s208, 8
      %s210 = scalar_lea.vmem %s2, %s209
      %s211 = smul.u32 3, %s17
      %s212 = smul.u32 32, %s18
      %v213 = vld [vmem:[%s192] sm:$0x7f]
      %v214 = vld [vmem:[%s192 + $0x8] sm:$0x7f]
      %v215 = vld [vmem:[%s192 + $0x10] sm:$0x7f]
      %v216 = vld [vmem:[%s192 + $0x18] sm:$0x7f]
      %v217 = vld [vmem:[%s192 + $0x20] sm:$0x7f]
      %v218 = vld [vmem:[%s192 + $0x28] sm:$0x7f]
      %v219 = vlaneseq
      %v220 = vshrl.u32 %v219, 7
      %vm221 = vcmp.eq.s32.totalorder %v220, 2
      %vm222 = vcmp.eq.s32.totalorder %v220, 3
      %vm223 = vmor %vm221, %vm222
      %v224 = vmul.f32 %v213, 1.442695
      %v225 = vpow.pop %v224
      %v226 = vmul.f32 %v214, 1.442695
      %v227 = vpow.pop %v226
      %v228 = vmul.f32 %v215, 1.442695
      %v229 = vpow.pop %v228
      %v230 = vmul.f32 %v216, 1.442695
      %v231 = vpow.pop %v230
      %v232 = vmul.f32 %v217, 1.442695
      %v233 = vpow.pop %v232
      %v234 = vmul.f32 %v218, 1.442695
      %v235 = vpow.pop %v234
      %v236 = vxor.u32 %v213, 2147483648
      %v237 = vxor.u32 %v214, 2147483648
      %v238 = vxor.u32 %v215, 2147483648
      %v239 = vxor.u32 %v216, 2147483648
      %v240 = vxor.u32 %v217, 2147483648
      %v241 = vxor.u32 %v218, 2147483648
      %v242 = vmul.f32 %v236, 1.442695
      %v243 = vpow.pop %v242
      %v244 = vmul.f32 %v237, 1.442695
      %v245 = vpow.pop %v244
      %v246 = vmul.f32 %v238, 1.442695
      %v247 = vpow.pop %v246
      %v248 = vmul.f32 %v239, 1.442695
      %v249 = vpow.pop %v248
      %v250 = vmul.f32 %v240, 1.442695
      %v251 = vpow.pop %v250
      %v252 = vmul.f32 %v241, 1.442695
      %v253 = vpow.pop %v252
      %v254 = vadd.f32 %v243, 1.0
      %v255 = vadd.f32 %v245, 1.0
      %v256 = vadd.f32 %v247, 1.0
      %v257 = vadd.f32 %v249, 1.0
      %v258 = vadd.f32 %v251, 1.0
      %v259 = vadd.f32 %v253, 1.0
      %v260 = vrcp.pop %v254
      %v261 = vmul.f32 %v254, %v260
      %v262 = vsub.f32 1.0, %v261
      %v263 = vmul.f32 %v260, %v262
      %v264 = vadd.f32 %v260, %v263
      %vm265 = vweird.f32 %v254
      %vm266 = vweird.f32 %v260
      %vm267 = vmor %vm265, %vm266
      %v268 = vsel %vm267, %v260, %v264
      %v269 = vand.u32 2147483647, %v254
      %vm270 = vcmp.eq.f32.partialorder %v269, 8.507059e+37
      %v271 = vand.u32 %v254, 2147483648
      %v272 = vor.u32 1.1754944e-38, %v271
      %v273 = vsel %vm270, %v272, %v268
      %v274 = vmul.f32 1.0, %v273
      %v275 = vrcp.pop %v255
      %v276 = vmul.f32 %v255, %v275
      %v277 = vsub.f32 1.0, %v276
      %v278 = vmul.f32 %v275, %v277
      %v279 = vadd.f32 %v275, %v278
      %vm280 = vweird.f32 %v255
      %vm281 = vweird.f32 %v275
      %vm282 = vmor %vm280, %vm281
      %v283 = vsel %vm282, %v275, %v279
      %v284 = vand.u32 2147483647, %v255
      %vm285 = vcmp.eq.f32.partialorder %v284, 8.507059e+37
      %v286 = vand.u32 %v255, 2147483648
      %v287 = vor.u32 1.1754944e-38, %v286
      %v288 = vsel %vm285, %v287, %v283
      %v289 = vmul.f32 1.0, %v288
      %v290 = vrcp.pop %v256
      %v291 = vmul.f32 %v256, %v290
      %v292 = vsub.f32 1.0, %v291
      %v293 = vmul.f32 %v290, %v292
      %v294 = vadd.f32 %v290, %v293
      %vm295 = vweird.f32 %v256
      %vm296 = vweird.f32 %v290
      %vm297 = vmor %vm295, %vm296
      %v298 = vsel %vm297, %v290, %v294
      %v299 = vand.u32 2147483647, %v256
      %vm300 = vcmp.eq.f32.partialorder %v299, 8.507059e+37
      %v301 = vand.u32 %v256, 2147483648
      %v302 = vor.u32 1.1754944e-38, %v301
      %v303 = vsel %vm300, %v302, %v298
      %v304 = vmul.f32 1.0, %v303
      %v305 = vrcp.pop %v257
      %v306 = vmul.f32 %v257, %v305
      %v307 = vsub.f32 1.0, %v306
      %v308 = vmul.f32 %v305, %v307
      %v309 = vadd.f32 %v305, %v308
      %vm310 = vweird.f32 %v257
      %vm311 = vweird.f32 %v305
      %vm312 = vmor %vm310, %vm311
      %v313 = vsel %vm312, %v305, %v309
      %v314 = vand.u32 2147483647, %v257
      %vm315 = vcmp.eq.f32.partialorder %v314, 8.507059e+37
      %v316 = vand.u32 %v257, 2147483648
      %v317 = vor.u32 1.1754944e-38, %v316
      %v318 = vsel %vm315, %v317, %v313
      %v319 = vmul.f32 1.0, %v318
      %v320 = vrcp.pop %v258
      %v321 = vmul.f32 %v258, %v320
      %v322 = vsub.f32 1.0, %v321
      %v323 = vmul.f32 %v320, %v322
      %v324 = vadd.f32 %v320, %v323
      %vm325 = vweird.f32 %v258
      %vm326 = vweird.f32 %v320
      %vm327 = vmor %vm325, %vm326
      %v328 = vsel %vm327, %v320, %v324
      %v329 = vand.u32 2147483647, %v258
      %vm330 = vcmp.eq.f32.partialorder %v329, 8.507059e+37
      %v331 = vand.u32 %v258, 2147483648
      %v332 = vor.u32 1.1754944e-38, %v331
      %v333 = vsel %vm330, %v332, %v328
      %v334 = vmul.f32 1.0, %v333
      %v335 = vrcp.pop %v259
      %v336 = vmul.f32 %v259, %v335
      %v337 = vsub.f32 1.0, %v336
      %v338 = vmul.f32 %v335, %v337
      %v339 = vadd.f32 %v335, %v338
      %vm340 = vweird.f32 %v259
      %vm341 = vweird.f32 %v335
      %vm342 = vmor %vm340, %vm341
      %v343 = vsel %vm342, %v335, %v339
      %v344 = vand.u32 2147483647, %v259
      %vm345 = vcmp.eq.f32.partialorder %v344, 8.507059e+37
      %v346 = vand.u32 %v259, 2147483648
      %v347 = vor.u32 1.1754944e-38, %v346
      %v348 = vsel %vm345, %v347, %v343
      %v349 = vmul.f32 1.0, %v348
      %v350 = vsel %vm223, 1, 0
      %vm351 = vcmp.eq.s32.totalorder %v350, 1
      %v352 = vsel %vm351, %v225, %v274
      %v353 = vsel %vm351, %v227, %v289
      %v354 = vsel %vm351, %v229, %v304
      %v355 = vsel %vm351, %v231, %v319
      %v356 = vsel %vm351, %v233, %v334
      %v357 = vsel %vm351, %v235, %v349
      %v358 = vlaneseq
      %v359 = vand.u32 %v358, 127
      %v360 = vadd.s32 %v359, 128
      %v361 = vcvt.s32.f32 %v359
      %v362 = vcvt.s32.f32 %v360
      %s363 = smul.u32 %s18, 256
      %s364 = scvt.s32.f32 %s363
      %v365 = vstv %s364
      %v366 = vadd.f32 %v361, %v365
      %v367 = vadd.f32 %v362, %v365
      %v368 = vadd.f32 %v366, 0.5
      %v369 = vadd.f32 %v367, 0.5
      %v370 = vrcp.pop 16.0
      %v371 = vmul.f32 16.0, %v370
      %v372 = vsub.f32 1.0, %v371
      %v373 = vmul.f32 %v370, %v372
      %v374 = vadd.f32 %v370, %v373
      %vm375 = vweird.f32 %v370
      %v376 = vsel %vm375, %v370, %v374
      %v377 = vmul.f32 %v368, %v376
      %v378 = vmul.f32 %v369, %v376
      %v379 = vfloor.f32 %v377
      %v380 = vfloor.f32 %v378
      %v381 = vmul.f32 %v379, 16.0
      %v382 = vmul.f32 %v380, 16.0
      %v383 = vsub.f32 %v366, %v381
      %v384 = vsub.f32 %v367, %v382
      %vm385 = vcmp.eq.s32.totalorder %v220, 0
      %vm386 = vcmp.eq.s32.totalorder %v220, 1
      %v387 = vsel %vm386, %v379, 0.0
      %v388 = vsel %vm386, %v380, 0.0
      %v389 = vsel %vm385, %v383, %v387
      %v390 = vsel %vm385, %v384, %v388
      %v391 = vadd.f32 %v352, %v389
      %v392 = vadd.f32 %v353, %v390
      %v393 = vadd.f32 %v354, %v389
      %v394 = vadd.f32 %v355, %v390
      %v395 = vadd.f32 %v356, %v389
      %v396 = vadd.f32 %v357, %v390
      %v397 = vld [vmem:[%s199] sm:$0x7f]
      %v398 = vld [vmem:[%s199 + $0x8] sm:$0x7f]
      %v399 = vld [vmem:[%s199 + $0x10] sm:$0x7f]
      %401 = vset.pattern.permute.xlu0 0
      %402 = vperm.xlu0 %401, %v397
      %v403 = vpop.permute.xlu0 %402
      %406 = vset.pattern.permute.xlu0 0
      %407 = vperm.xlu0 %406, %v398
      %v408 = vpop.permute.xlu0 %407
      %411 = vset.pattern.permute.xlu0 0
      %412 = vperm.xlu0 %411, %v399
      %v413 = vpop.permute.xlu0 %412
      %v415 = vmul.f32 %v391, %v403
      %v416 = vmul.f32 %v392, %v403
      %v417 = vmul.f32 %v393, %v408
      %v418 = vmul.f32 %v394, %v408
      %v419 = vmul.f32 %v395, %v413
      %v420 = vmul.f32 %v396, %v413
      %vm421 = vcmask 1046528
      %v422 = vsel %vm421, %v415, 0.0
      %v423 = vsel %vm421, %v416, 0.0
      %v424 = vsel %vm421, %v417, 0.0
      %v425 = vsel %vm421, %v418, 0.0
      %v426 = vsel %vm421, %v419, 0.0
      %v427 = vsel %vm421, %v420, 0.0
      %428 = vxpose.xlu0.b32.start [1/16] %v422, 128
      %429 = vxpose.xlu0.b32.cont [2/16] 0.0, 128
      %430 = vxpose.xlu0.b32.cont [3/16] 0.0, 128
      %431 = vxpose.xlu0.b32.cont [4/16] 0.0, 128
      %432 = vxpose.xlu0.b32.cont [5/16] 0.0, 128
      %433 = vxpose.xlu0.b32.cont [6/16] 0.0, 128
      %434 = vxpose.xlu0.b32.cont [7/16] 0.0, 128
      %435 = vxpose.xlu0.b32.cont [8/16] 0.0, 128
      %436 = vxpose.xlu0.b32.cont [9/16] 0.0, 128
      %437 = vxpose.xlu0.b32.cont [10/16] 0.0, 128
      %438 = vxpose.xlu0.b32.cont [11/16] 0.0, 128
      %439 = vxpose.xlu0.b32.cont [12/16] 0.0, 128
      %440 = vxpose.xlu0.b32.cont [13/16] 0.0, 128
      %441 = vxpose.xlu0.b32.cont [14/16] 0.0, 128
      %442 = vxpose.xlu0.b32.cont [15/16] 0.0, 128
      %443 = vxpose.xlu0.b32.end [16/16] 0.0, 128
      %v444 = vpop.trf.xlu0
      %v445 = vpop.trf.xlu0
      %v446 = vpop.trf.xlu0
      %v447 = vpop.trf.xlu0
      %v448 = vpop.trf.xlu0
      %v449 = vpop.trf.xlu0
      %v450 = vpop.trf.xlu0
      %v451 = vpop.trf.xlu0
      %v452 = vpop.trf.xlu0
      %v453 = vpop.trf.xlu0
      %v454 = vpop.trf.xlu0
      %v455 = vpop.trf.xlu0
      %v456 = vpop.trf.xlu0
      %v457 = vpop.trf.xlu0
      %v458 = vpop.trf.xlu0
      %v459 = vpop.trf.xlu0
      %460 = vxpose.xlu0.b32.start [1/16] %v423, 128
      %461 = vxpose.xlu0.b32.cont [2/16] 0.0, 128
      %462 = vxpose.xlu0.b32.cont [3/16] 0.0, 128
      %463 = vxpose.xlu0.b32.cont [4/16] 0.0, 128
      %464 = vxpose.xlu0.b32.cont [5/16] 0.0, 128
      %465 = vxpose.xlu0.b32.cont [6/16] 0.0, 128
      %466 = vxpose.xlu0.b32.cont [7/16] 0.0, 128
      %467 = vxpose.xlu0.b32.cont [8/16] 0.0, 128
      %468 = vxpose.xlu0.b32.cont [9/16] 0.0, 128
      %469 = vxpose.xlu0.b32.cont [10/16] 0.0, 128
      %470 = vxpose.xlu0.b32.cont [11/16] 0.0, 128
      %471 = vxpose.xlu0.b32.cont [12/16] 0.0, 128
      %472 = vxpose.xlu0.b32.cont [13/16] 0.0, 128
      %473 = vxpose.xlu0.b32.cont [14/16] 0.0, 128
      %474 = vxpose.xlu0.b32.cont [15/16] 0.0, 128
      %475 = vxpose.xlu0.b32.end [16/16] 0.0, 128
      %v476 = vpop.trf.xlu0
      %v477 = vpop.trf.xlu0
      %v478 = vpop.trf.xlu0
      %v479 = vpop.trf.xlu0
      %v480 = vpop.trf.xlu0
      %v481 = vpop.trf.xlu0
      %v482 = vpop.trf.xlu0
      %v483 = vpop.trf.xlu0
      %v484 = vpop.trf.xlu0
      %v485 = vpop.trf.xlu0
      %v486 = vpop.trf.xlu0
      %v487 = vpop.trf.xlu0
      %v488 = vpop.trf.xlu0
      %v489 = vpop.trf.xlu0
      %v490 = vpop.trf.xlu0
      %v491 = vpop.trf.xlu0
      %492 = vxpose.xlu0.b32.start [1/16] %v424, 128
      %493 = vxpose.xlu0.b32.cont [2/16] 0.0, 128
      %494 = vxpose.xlu0.b32.cont [3/16] 0.0, 128
      %495 = vxpose.xlu0.b32.cont [4/16] 0.0, 128
      %496 = vxpose.xlu0.b32.cont [5/16] 0.0, 128
      %497 = vxpose.xlu0.b32.cont [6/16] 0.0, 128
      %498 = vxpose.xlu0.b32.cont [7/16] 0.0, 128
      %499 = vxpose.xlu0.b32.cont [8/16] 0.0, 128
      %500 = vxpose.xlu0.b32.cont [9/16] 0.0, 128
      %501 = vxpose.xlu0.b32.cont [10/16] 0.0, 128
      %502 = vxpose.xlu0.b32.cont [11/16] 0.0, 128
      %503 = vxpose.xlu0.b32.cont [12/16] 0.0, 128
      %504 = vxpose.xlu0.b32.cont [13/16] 0.0, 128
      %505 = vxpose.xlu0.b32.cont [14/16] 0.0, 128
      %506 = vxpose.xlu0.b32.cont [15/16] 0.0, 128
      %507 = vxpose.xlu0.b32.end [16/16] 0.0, 128
      %v508 = vpop.trf.xlu0
      %v509 = vpop.trf.xlu0
      %v510 = vpop.trf.xlu0
      %v511 = vpop.trf.xlu0
      %v512 = vpop.trf.xlu0
      %v513 = vpop.trf.xlu0
      %v514 = vpop.trf.xlu0
      %v515 = vpop.trf.xlu0
      %v516 = vpop.trf.xlu0
      %v517 = vpop.trf.xlu0
      %v518 = vpop.trf.xlu0
      %v519 = vpop.trf.xlu0
      %v520 = vpop.trf.xlu0
      %v521 = vpop.trf.xlu0
      %v522 = vpop.trf.xlu0
      %v523 = vpop.trf.xlu0
      %524 = vxpose.xlu0.b32.start [1/16] %v425, 128
      %525 = vxpose.xlu0.b32.cont [2/16] 0.0, 128
      %526 = vxpose.xlu0.b32.cont [3/16] 0.0, 128
      %527 = vxpose.xlu0.b32.cont [4/16] 0.0, 128
      %528 = vxpose.xlu0.b32.cont [5/16] 0.0, 128
      %529 = vxpose.xlu0.b32.cont [6/16] 0.0, 128
      %530 = vxpose.xlu0.b32.cont [7/16] 0.0, 128
      %531 = vxpose.xlu0.b32.cont [8/16] 0.0, 128
      %532 = vxpose.xlu0.b32.cont [9/16] 0.0, 128
      %533 = vxpose.xlu0.b32.cont [10/16] 0.0, 128
      %534 = vxpose.xlu0.b32.cont [11/16] 0.0, 128
      %535 = vxpose.xlu0.b32.cont [12/16] 0.0, 128
      %536 = vxpose.xlu0.b32.cont [13/16] 0.0, 128
      %537 = vxpose.xlu0.b32.cont [14/16] 0.0, 128
      %538 = vxpose.xlu0.b32.cont [15/16] 0.0, 128
      %539 = vxpose.xlu0.b32.end [16/16] 0.0, 128
      %v540 = vpop.trf.xlu0
      %v541 = vpop.trf.xlu0
      %v542 = vpop.trf.xlu0
      %v543 = vpop.trf.xlu0
      %v544 = vpop.trf.xlu0
      %v545 = vpop.trf.xlu0
      %v546 = vpop.trf.xlu0
      %v547 = vpop.trf.xlu0
      %v548 = vpop.trf.xlu0
      %v549 = vpop.trf.xlu0
      %v550 = vpop.trf.xlu0
      %v551 = vpop.trf.xlu0
      %v552 = vpop.trf.xlu0
      %v553 = vpop.trf.xlu0
      %v554 = vpop.trf.xlu0
      %v555 = vpop.trf.xlu0
      %556 = vxpose.xlu0.b32.start [1/16] %v426, 128
      %557 = vxpose.xlu0.b32.cont [2/16] 0.0, 128
      %558 = vxpose.xlu0.b32.cont [3/16] 0.0, 128
      %559 = vxpose.xlu0.b32.cont [4/16] 0.0, 128
      %560 = vxpose.xlu0.b32.cont [5/16] 0.0, 128
      %561 = vxpose.xlu0.b32.cont [6/16] 0.0, 128
      %562 = vxpose.xlu0.b32.cont [7/16] 0.0, 128
      %563 = vxpose.xlu0.b32.cont [8/16] 0.0, 128
      %564 = vxpose.xlu0.b32.cont [9/16] 0.0, 128
      %565 = vxpose.xlu0.b32.cont [10/16] 0.0, 128
      %566 = vxpose.xlu0.b32.cont [11/16] 0.0, 128
      %567 = vxpose.xlu0.b32.cont [12/16] 0.0, 128
      %568 = vxpose.xlu0.b32.cont [13/16] 0.0, 128
      %569 = vxpose.xlu0.b32.cont [14/16] 0.0, 128
      %570 = vxpose.xlu0.b32.cont [15/16] 0.0, 128
      %571 = vxpose.xlu0.b32.end [16/16] 0.0, 128
      %v572 = vpop.trf.xlu0
      %v573 = vpop.trf.xlu0
      %v574 = vpop.trf.xlu0
      %v575 = vpop.trf.xlu0
      %v576 = vpop.trf.xlu0
      %v577 = vpop.trf.xlu0
      %v578 = vpop.trf.xlu0
      %v579 = vpop.trf.xlu0
      %v580 = vpop.trf.xlu0
      %v581 = vpop.trf.xlu0
      %v582 = vpop.trf.xlu0
      %v583 = vpop.trf.xlu0
      %v584 = vpop.trf.xlu0
      %v585 = vpop.trf.xlu0
      %v586 = vpop.trf.xlu0
      %v587 = vpop.trf.xlu0
      %588 = vxpose.xlu0.b32.start [1/16] %v427, 128
      %589 = vxpose.xlu0.b32.cont [2/16] 0.0, 128
      %590 = vxpose.xlu0.b32.cont [3/16] 0.0, 128
      %591 = vxpose.xlu0.b32.cont [4/16] 0.0, 128
      %592 = vxpose.xlu0.b32.cont [5/16] 0.0, 128
      %593 = vxpose.xlu0.b32.cont [6/16] 0.0, 128
      %594 = vxpose.xlu0.b32.cont [7/16] 0.0, 128
      %595 = vxpose.xlu0.b32.cont [8/16] 0.0, 128
      %596 = vxpose.xlu0.b32.cont [9/16] 0.0, 128
      %597 = vxpose.xlu0.b32.cont [10/16] 0.0, 128
      %598 = vxpose.xlu0.b32.cont [11/16] 0.0, 128
      %599 = vxpose.xlu0.b32.cont [12/16] 0.0, 128
      %600 = vxpose.xlu0.b32.cont [13/16] 0.0, 128
      %601 = vxpose.xlu0.b32.cont [14/16] 0.0, 128
      %602 = vxpose.xlu0.b32.cont [15/16] 0.0, 128
      %603 = vxpose.xlu0.b32.end [16/16] 0.0, 128
      %v604 = vpop.trf.xlu0
      %v605 = vpop.trf.xlu0
      %v606 = vpop.trf.xlu0
      %v607 = vpop.trf.xlu0
      %v608 = vpop.trf.xlu0
      %v609 = vpop.trf.xlu0
      %v610 = vpop.trf.xlu0
      %v611 = vpop.trf.xlu0
      %v612 = vpop.trf.xlu0
      %v613 = vpop.trf.xlu0
      %v614 = vpop.trf.xlu0
      %v615 = vpop.trf.xlu0
      %v616 = vpop.trf.xlu0
      %v617 = vpop.trf.xlu0
      %v618 = vpop.trf.xlu0
      %v619 = vpop.trf.xlu0
      %vm620 = vcmask 56320
      %621 = vst.msk [vmem:[%s210] sm:$0xff] %vm620, %v444
      %622 = vst.msk [vmem:[%s210 + $0x8] sm:$0xff] %vm620, %v445
      %623 = vst.msk [vmem:[%s210 + $0x10] sm:$0xff] %vm620, %v446
      %624 = vst.msk [vmem:[%s210 + $0x18] sm:$0xff] %vm620, %v447
      %625 = vst.msk [vmem:[%s210 + $0x20] sm:$0xff] %vm620, %v448
      %626 = vst.msk [vmem:[%s210 + $0x28] sm:$0xff] %vm620, %v449
      %627 = vst.msk [vmem:[%s210 + $0x30] sm:$0xff] %vm620, %v450
      %628 = vst.msk [vmem:[%s210 + $0x38] sm:$0xff] %vm620, %v451
      %629 = vst.msk [vmem:[%s210 + $0x40] sm:$0xff] %vm620, %v452
      %630 = vst.msk [vmem:[%s210 + $0x48] sm:$0xff] %vm620, %v453
      %631 = vst.msk [vmem:[%s210 + $0x50] sm:$0xff] %vm620, %v454
      %632 = vst.msk [vmem:[%s210 + $0x58] sm:$0xff] %vm620, %v455
      %633 = vst.msk [vmem:[%s210 + $0x60] sm:$0xff] %vm620, %v456
      %634 = vst.msk [vmem:[%s210 + $0x68] sm:$0xff] %vm620, %v457
      %635 = vst.msk [vmem:[%s210 + $0x70] sm:$0xff] %vm620, %v458
      %636 = vst.msk [vmem:[%s210 + $0x78] sm:$0xff] %vm620, %v459
      %637 = vst.msk [vmem:[%s210 + $0x80] sm:$0xff] %vm620, %v476
      %638 = vst.msk [vmem:[%s210 + $0x88] sm:$0xff] %vm620, %v477
      %639 = vst.msk [vmem:[%s210 + $0x90] sm:$0xff] %vm620, %v478
      %640 = vst.msk [vmem:[%s210 + $0x98] sm:$0xff] %vm620, %v479
      %641 = vst.msk [vmem:[%s210 + $0xa0] sm:$0xff] %vm620, %v480
      %642 = vst.msk [vmem:[%s210 + $0xa8] sm:$0xff] %vm620, %v481
      %643 = vst.msk [vmem:[%s210 + $0xb0] sm:$0xff] %vm620, %v482
      %644 = vst.msk [vmem:[%s210 + $0xb8] sm:$0xff] %vm620, %v483
      %645 = vst.msk [vmem:[%s210 + $0xc0] sm:$0xff] %vm620, %v484
      %646 = vst.msk [vmem:[%s210 + $0xc8] sm:$0xff] %vm620, %v485
      %647 = vst.msk [vmem:[%s210 + $0xd0] sm:$0xff] %vm620, %v486
      %648 = vst.msk [vmem:[%s210 + $0xd8] sm:$0xff] %vm620, %v487
      %649 = vst.msk [vmem:[%s210 + $0xe0] sm:$0xff] %vm620, %v488
      %650 = vst.msk [vmem:[%s210 + $0xe8] sm:$0xff] %vm620, %v489
      %651 = vst.msk [vmem:[%s210 + $0xf0] sm:$0xff] %vm620, %v490
      %652 = vst.msk [vmem:[%s210 + $0xf8] sm:$0xff] %vm620, %v491
      %653 = vst.msk [vmem:[%s210 + $0x100] sm:$0xff] %vm620, %v508
      %654 = vst.msk [vmem:[%s210 + $0x108] sm:$0xff] %vm620, %v509
      %655 = vst.msk [vmem:[%s210 + $0x110] sm:$0xff] %vm620, %v510
      %656 = vst.msk [vmem:[%s210 + $0x118] sm:$0xff] %vm620, %v511
      %657 = vst.msk [vmem:[%s210 + $0x120] sm:$0xff] %vm620, %v512
      %658 = vst.msk [vmem:[%s210 + $0x128] sm:$0xff] %vm620, %v513
      %659 = vst.msk [vmem:[%s210 + $0x130] sm:$0xff] %vm620, %v514
      %660 = vst.msk [vmem:[%s210 + $0x138] sm:$0xff] %vm620, %v515
      %661 = vst.msk [vmem:[%s210 + $0x140] sm:$0xff] %vm620, %v516
      %662 = vst.msk [vmem:[%s210 + $0x148] sm:$0xff] %vm620, %v517
      %663 = vst.msk [vmem:[%s210 + $0x150] sm:$0xff] %vm620, %v518
      %664 = vst.msk [vmem:[%s210 + $0x158] sm:$0xff] %vm620, %v519
      %665 = vst.msk [vmem:[%s210 + $0x160] sm:$0xff] %vm620, %v520
      %666 = vst.msk [vmem:[%s210 + $0x168] sm:$0xff] %vm620, %v521
      %667 = vst.msk [vmem:[%s210 + $0x170] sm:$0xff] %vm620, %v522
      %668 = vst.msk [vmem:[%s210 + $0x178] sm:$0xff] %vm620, %v523
      %669 = vst.msk [vmem:[%s210 + $0x180] sm:$0xff] %vm620, %v540
      %670 = vst.msk [vmem:[%s210 + $0x188] sm:$0xff] %vm620, %v541
      %671 = vst.msk [vmem:[%s210 + $0x190] sm:$0xff] %vm620, %v542
      %672 = vst.msk [vmem:[%s210 + $0x198] sm:$0xff] %vm620, %v543
      %673 = vst.msk [vmem:[%s210 + $0x1a0] sm:$0xff] %vm620, %v544
      %674 = vst.msk [vmem:[%s210 + $0x1a8] sm:$0xff] %vm620, %v545
      %675 = vst.msk [vmem:[%s210 + $0x1b0] sm:$0xff] %vm620, %v546
      %676 = vst.msk [vmem:[%s210 + $0x1b8] sm:$0xff] %vm620, %v547
      %677 = vst.msk [vmem:[%s210 + $0x1c0] sm:$0xff] %vm620, %v548
      %678 = vst.msk [vmem:[%s210 + $0x1c8] sm:$0xff] %vm620, %v549
      %679 = vst.msk [vmem:[%s210 + $0x1d0] sm:$0xff] %vm620, %v550
      %680 = vst.msk [vmem:[%s210 + $0x1d8] sm:$0xff] %vm620, %v551
      %681 = vst.msk [vmem:[%s210 + $0x1e0] sm:$0xff] %vm620, %v552
      %682 = vst.msk [vmem:[%s210 + $0x1e8] sm:$0xff] %vm620, %v553
      %683 = vst.msk [vmem:[%s210 + $0x1f0] sm:$0xff] %vm620, %v554
      %684 = vst.msk [vmem:[%s210 + $0x1f8] sm:$0xff] %vm620, %v555
      %685 = vst.msk [vmem:[%s210 + $0x200] sm:$0xff] %vm620, %v572
      %686 = vst.msk [vmem:[%s210 + $0x208] sm:$0xff] %vm620, %v573
      %687 = vst.msk [vmem:[%s210 + $0x210] sm:$0xff] %vm620, %v574
      %688 = vst.msk [vmem:[%s210 + $0x218] sm:$0xff] %vm620, %v575
      %689 = vst.msk [vmem:[%s210 + $0x220] sm:$0xff] %vm620, %v576
      %690 = vst.msk [vmem:[%s210 + $0x228] sm:$0xff] %vm620, %v577
      %691 = vst.msk [vmem:[%s210 + $0x230] sm:$0xff] %vm620, %v578
      %692 = vst.msk [vmem:[%s210 + $0x238] sm:$0xff] %vm620, %v579
      %693 = vst.msk [vmem:[%s210 + $0x240] sm:$0xff] %vm620, %v580
      %694 = vst.msk [vmem:[%s210 + $0x248] sm:$0xff] %vm620, %v581
      %695 = vst.msk [vmem:[%s210 + $0x250] sm:$0xff] %vm620, %v582
      %696 = vst.msk [vmem:[%s210 + $0x258] sm:$0xff] %vm620, %v583
      %697 = vst.msk [vmem:[%s210 + $0x260] sm:$0xff] %vm620, %v584
      %698 = vst.msk [vmem:[%s210 + $0x268] sm:$0xff] %vm620, %v585
      %699 = vst.msk [vmem:[%s210 + $0x270] sm:$0xff] %vm620, %v586
      %700 = vst.msk [vmem:[%s210 + $0x278] sm:$0xff] %vm620, %v587
      %701 = vst.msk [vmem:[%s210 + $0x280] sm:$0xff] %vm620, %v604
      %702 = vst.msk [vmem:[%s210 + $0x288] sm:$0xff] %vm620, %v605
      %703 = vst.msk [vmem:[%s210 + $0x290] sm:$0xff] %vm620, %v606
      %704 = vst.msk [vmem:[%s210 + $0x298] sm:$0xff] %vm620, %v607
      %705 = vst.msk [vmem:[%s210 + $0x2a0] sm:$0xff] %vm620, %v608
      %706 = vst.msk [vmem:[%s210 + $0x2a8] sm:$0xff] %vm620, %v609
      %707 = vst.msk [vmem:[%s210 + $0x2b0] sm:$0xff] %vm620, %v610
      %708 = vst.msk [vmem:[%s210 + $0x2b8] sm:$0xff] %vm620, %v611
      %709 = vst.msk [vmem:[%s210 + $0x2c0] sm:$0xff] %vm620, %v612
      %710 = vst.msk [vmem:[%s210 + $0x2c8] sm:$0xff] %vm620, %v613
      %711 = vst.msk [vmem:[%s210 + $0x2d0] sm:$0xff] %vm620, %v614
      %712 = vst.msk [vmem:[%s210 + $0x2d8] sm:$0xff] %vm620, %v615
      %713 = vst.msk [vmem:[%s210 + $0x2e0] sm:$0xff] %vm620, %v616
      %714 = vst.msk [vmem:[%s210 + $0x2e8] sm:$0xff] %vm620, %v617
      %715 = vst.msk [vmem:[%s210 + $0x2f0] sm:$0xff] %vm620, %v618
      %716 = vst.msk [vmem:[%s210 + $0x2f8] sm:$0xff] %vm620, %v619
      %s717 = smul.u32 3, %s17
      %s718 = smul.u32 32, %s18
      %p719 = scmp.lt.s32.totalorder %s717, 5
      %s720 = scalar_select %p719, %s717, 5
      %p721 = scmp.lt.s32.totalorder %s718, 31
      %s722 = scalar_select %p721, %s718, 31
      %s723 = smul.addr %s720, 32
      %s724 = sadd.s32 %s722, %s723
      %s725 = smul.addr %s724, 8
      %s726 = scalar_lea.vmem %s2, %s725
      // Predicated region
      $region29: #{_lambda_.1} parent=27 // pred_check
        %p727 = pneg %p99
      $region30: #{_lambda_.1} parent=27 // pred_check_branch
        %729 = sbr.rel (%p727) target = $region32
      $region31: #{_lambda_.1} parent=27 // pred_region
        %s730 = smul.u32 3, %s17
        %s731 = smul.u32 32, %s18
      $region32: #{_lambda_.1} parent=27 // pred_fallthru
        _
    $region28: #{_lambda_.1} parent=5 // pred_fallthru
      _
    %p732 = scmp.le.s32.totalorder 2, %s8
    // Predicated region
    $region33: #{_lambda_.1} parent=5 // pred_check
      %p733 = pneg %p732
    $region34: #{_lambda_.1} parent=5 // pred_check_branch
      %735 = sbr.rel (%p733) target = $region36
    $region35: #{_lambda_.1} parent=5 // pred_region
      %s736 = ssub.s32 %s8, 2
      // Predicated region
      $region37: #{_lambda_.1} parent=35 // pred_check
        %p737 = pneg %p105
      $region38: #{_lambda_.1} parent=35 // pred_check_branch
        %739 = sbr.rel (%p737) target = $region40
      $region39: #{_lambda_.1} parent=35 // pred_region
        %s740 = smul.u32 3, %s19
        %s741 = smul.u32 32, %s20
        %p742 = scmp.lt.s32.totalorder %s740, 5
        %s743 = scalar_select %p742, %s740, 5
        %p744 = scmp.lt.s32.totalorder %s741, 31
        %s745 = scalar_select %p744, %s741, 31
        %s746 = smul.addr %s743, 32
        %s747 = sadd.s32 %s745, %s746
        %s748 = smul.addr %s747, 8
        %s749 = scalar_lea.vmem %s2, %s748
      $region40: #{_lambda_.1} parent=35 // pred_fallthru
        _
    $region36: #{_lambda_.1} parent=5 // pred_fallthru
      _
  $region6: #{_lambda_.1} parent=0 // loop_footer
    %s12 = sadd.s32 1, %s8
  $region7: #{_lambda_.1} parent=0 // loop_footer_branch
    %7 = sbr.rel target = $region3
  $region8: #{_lambda_.1} parent=0 // loop_exit
    _

</llo_original>
